<compile_context>
chip_gen: v7x
topology: tpu7x:2x2x1
jax: 0.10.0
libtpu: 0.0.40
codegen_flags: <defaults>
</compile_context>

<pallas_src>
import jax
import jax.numpy as jnp
from jax.experimental import pallas as pl
from jax.experimental.pallas import tpu as pltpu

DEFAULT_TILE_N = 1024  # lane-axis batch tile; multiple of 128


def rawnet_kernel(x_ref, w1_ref, w2_ref, p_ref, o_ref):
    x = x_ref[...]                      # (TILE_N, 2)  batch tile, natural HBM layout
    p = p_ref[...]                      # (H, 4)       packed [b1 | b2 | w3 | b3]
    b1 = p[:, 0:1]                      # (H, 1)
    b2 = p[:, 1:2]                      # (H, 1)
    w3 = p[:, 2:3]                      # (H, 1)
    b3 = p[0:1, 3:4]                    # (1, 1)

    # --- Layer 1 (fc1): contract the K=2 feature dim of x directly against w1 using the
    #     A @ B^T dot_general form, so batch lands on the lane axis with NO wrapper-side
    #     transpose.  The MXU is otherwise nearly idle, so a K=2 matmul on it is free.
    h1 = jnp.tanh(
        jax.lax.dot_general(w1_ref[...], x, (((1,), (1,)), ((), ())),
                            preferred_element_type=jnp.float32) + b1)      # (H, TILE_N)

    # --- Layer 2 (fc2): the real matmul, (H,H)@(H,TILE_N) on the MXU, f32 accumulate.
    h2 = jnp.tanh(
        jnp.dot(w2_ref[...], h1, preferred_element_type=jnp.float32) + b2)  # (H, TILE_N)

    # --- Layer 3 (fc3): single output unit -> elementwise mul + sublane (XLU) reduce
    #     instead of an (H,1)-shaped MXU op; the output row stays fully lane-dense.
    logits = jnp.sum(w3 * h2, axis=0, keepdims=True) + b3                   # (1, TILE_N)
    o_ref[...] = jax.nn.sigmoid(logits).astype(o_ref.dtype)


def rawnet_forward(x, w1, b1, w2, b2, w3, b3, *, tile_n=DEFAULT_TILE_N):
    """x: (N, 2). Weights in PyTorch nn.Linear layout: w1 (H,2), b1 (H,), w2 (H,H),
    b2 (H,), w3 (1,H), b3 (1,). Returns (N, 1) sigmoid outputs (RawNet.forward)."""
    n = x.shape[0]
    num_hid = w1.shape[0]

    # ---- tile selection ------------------------------------------------------------
    n128 = pl.cdiv(n, 128) * 128
    tile_n = max(128, (min(tile_n, n128) // 128) * 128)
    # v7x has two TensorCores: make sure the "parallel" batch grid has >= 2 steps
    # whenever the batch is large enough to split (no-op on single-TC v5e/v6e).
    if pl.cdiv(n, tile_n) < 2 and n128 >= 2 * 128:
        tile_n = (n128 // (2 * 128)) * 128
    grid_n = pl.cdiv(n, tile_n)

    # ---- VMEM budget (only bites when num_hid / tile_n are scaled up) ---------------
    est_vmem = 4 * (2 * num_hid * tile_n          # h1/h2 f32 temporaries
                    + 2 * num_hid * num_hid       # w2 (worst case double-buffered)
                    + 2 * 3 * tile_n              # double-buffered x / out tiles
                    + 2 * 128 * num_hid)          # w1 + packed vectors, lane-padded
    vmem_limit = None
    if est_vmem > 16 * 1024 * 1024:
        # TODO(synk): on v7x (64 MiB physical VMEM per TC) shrink tile_n instead of
        # pushing the scoped limit toward the physical ceiling.
        vmem_limit = min(2 * est_vmem, 64 * 1024 * 1024)

    # ---- inputs: no transpose / no batch padding in the wrapper ---------------------
    xf = x.astype(jnp.float32)
    w1f = w1.astype(jnp.float32)
    w2f = w2.astype(jnp.float32)
    packed = jnp.concatenate(
        [b1.reshape(num_hid, 1),
         b2.reshape(num_hid, 1),
         w3.reshape(num_hid, 1),                                   # (1,H) -> column
         jnp.broadcast_to(b3.reshape(1, 1), (num_hid, 1))],
        axis=1).astype(jnp.float32)                                # (H, 4)

    # Weight blocks have constant index_maps (resident across the grid).  At H=32 the
    # extra pipeline buffer is negligible; for large H consider pipeline_mode=
    # pl.Buffered(1) on them to reclaim VMEM.
    out = pl.pallas_call(
        rawnet_kernel,
        out_shape=jax.ShapeDtypeStruct((grid_n, tile_n), jnp.float32),
        grid=(grid_n,),
        in_specs=[
            pl.BlockSpec((tile_n, 2), lambda i: (i, 0)),            # x batch tile
            pl.BlockSpec((num_hid, 2), lambda i: (0, 0)),           # w1 (resident)
            pl.BlockSpec((num_hid, num_hid), lambda i: (0, 0)),     # w2 (resident)
            pl.BlockSpec((num_hid, 4), lambda i: (0, 0)),           # packed b1|b2|w3|b3
        ],
        out_specs=pl.BlockSpec((1, tile_n), lambda i: (i, 0)),      # lane-dense rows
        compiler_params=pltpu.CompilerParams(
            dimension_semantics=("parallel",),                      # shard batch on v7x
            vmem_limit_bytes=vmem_limit),
    )(xf, w1f, w2f, packed)

    # Rows are tiles of tile_n consecutive samples; the ragged-tail columns (computed
    # from Pallas' padded edge block) are sliced off here.  Return PyTorch-shaped (N,1).
    return out.reshape(-1)[:n].reshape(n, 1)


def init_params(key, num_hid):
    # nn.Linear default init: U(-1/sqrt(fan_in), 1/sqrt(fan_in)), PyTorch
    # [out_features, in_features] layout.
    ks = jax.random.split(key, 6)

    def uniform(k, shape, fan_in):
        bound = 1.0 / jnp.sqrt(jnp.float32(fan_in))
        return jax.random.uniform(k, shape, jnp.float32, -bound, bound)

    w1 = uniform(ks[0], (num_hid, 2), 2)
    b1 = uniform(ks[1], (num_hid,), 2)
    w2 = uniform(ks[2], (num_hid, num_hid), num_hid)
    b2 = uniform(ks[3], (num_hid,), num_hid)
    w3 = uniform(ks[4], (1, num_hid), num_hid)
    b3 = uniform(ks[5], (1,), num_hid)
    return w1, b1, w2, b2, w3, b3


def rawnet_reference(x, w1, b1, w2, b2, w3, b3):
    h1 = jnp.tanh(x @ w1.T + b1)
    h2 = jnp.tanh(h1 @ w2.T + b2)
    return jax.nn.sigmoid(h2 @ w3.T + b3)


if __name__ == "__main__":
    key = jax.random.PRNGKey(0)
    k_x, k_p, k_x2 = jax.random.split(key, 3)

    num_hid = 32
    params = init_params(k_p, num_hid)

    # Spiral-dataset-sized batch (the module's temp buffers are [97, 1]).
    x = jax.random.normal(k_x, (97, 2), jnp.float32)
    out = jax.block_until_ready(rawnet_forward(x, *params))
    ref = rawnet_reference(x, *params)
    assert out.shape == (97, 1)
    assert jnp.allclose(out, ref, atol=1e-5, rtol=1e-5)

    # Larger batch: exercises the multi-step "parallel" grid (>=2 tiles for v7x) and
    # the ragged-tail (partial edge block) path.
    x2 = jax.random.normal(k_x2, (1000, 2), jnp.float32)
    out2 = jax.block_until_ready(rawnet_forward(x2, *params))
    ref2 = rawnet_reference(x2, *params)
    assert out2.shape == (1000, 1)
    assert jnp.allclose(out2, ref2, atol=1e-5, rtol=1e-5)

    print("KERNEL_OK")
</pallas_src>

<mosaic_0001>
module attributes {stable_mosaic.version = 11 : i64} {
  func.func @rawnet_kernel(%arg0: i32, %arg1: memref<128x2xf32, #tpu.memory_space<vmem>>, %arg2: memref<32x2xf32, #tpu.memory_space<vmem>>, %arg3: memref<32x32xf32, #tpu.memory_space<vmem>>, %arg4: memref<32x4xf32, #tpu.memory_space<vmem>>, %arg5: memref<1x128xf32, #tpu.memory_space<vmem>>) attributes {dimension_semantics = [#tpu.dimension_semantics<parallel>], iteration_bounds = array<i64: 1>, scalar_prefetch = 0 : i64, scratch_operands = 0 : i64, tpu.core_type = #tpu.core_type<tc>, window_params = [{transform_indices = @transform_0, window_bounds = array<i64: 128, 2>}, {pipeline_mode = #tpu.pipeline_mode<synchronous>, transform_indices = @transform_1, window_bounds = array<i64: 32, 2>}, {pipeline_mode = #tpu.pipeline_mode<synchronous>, transform_indices = @transform_2, window_bounds = array<i64: 32, 32>}, {pipeline_mode = #tpu.pipeline_mode<synchronous>, transform_indices = @transform_3, window_bounds = array<i64: 32, 4>}, {transform_indices = @transform_4, window_bounds = array<i64: 1, 128>}]} {
    %c0 = arith.constant 0 : index
    %c0_0 = arith.constant 0 : index
    %0 = vector.load %arg1[%c0, %c0_0] : memref<128x2xf32, #tpu.memory_space<vmem>>, vector<128x2xf32>
    %c0_1 = arith.constant 0 : index
    %c0_2 = arith.constant 0 : index
    %1 = vector.load %arg4[%c0_1, %c0_2] : memref<32x4xf32, #tpu.memory_space<vmem>>, vector<32x4xf32>
    %2 = vector.extract_strided_slice %1 {offsets = [0, 0], sizes = [32, 1], strides = [1, 1]} : vector<32x4xf32> to vector<32x1xf32>
    %3 = vector.extract_strided_slice %1 {offsets = [0, 1], sizes = [32, 1], strides = [1, 1]} : vector<32x4xf32> to vector<32x1xf32>
    %4 = vector.extract_strided_slice %1 {offsets = [0, 2], sizes = [32, 1], strides = [1, 1]} : vector<32x4xf32> to vector<32x1xf32>
    %5 = vector.extract_strided_slice %1 {offsets = [0, 3], sizes = [1, 1], strides = [1, 1]} : vector<32x4xf32> to vector<1x1xf32>
    %c0_3 = arith.constant 0 : index
    %c0_4 = arith.constant 0 : index
    %6 = vector.load %arg2[%c0_3, %c0_4] : memref<32x2xf32, #tpu.memory_space<vmem>>, vector<32x2xf32>
    %cst = arith.constant dense<0.000000e+00> : vector<32x128xf32>
    %7 = tpu.matmul %6, %0, %cst {dimension_numbers = #tpu.dot_dimension_numbers<[1], [1], [0], [0], [0, 0, 1, 0], [], []>} : vector<32x2xf32>, vector<128x2xf32>, vector<32x128xf32> -> vector<32x128xf32>
    %8 = vector.broadcast %2 : vector<32x1xf32> to vector<32x128xf32>
    %9 = arith.addf %7, %8 : vector<32x128xf32>
    %10 = math.tanh %9 : vector<32x128xf32>
    %c0_5 = arith.constant 0 : index
    %c0_6 = arith.constant 0 : index
    %11 = vector.load %arg3[%c0_5, %c0_6] : memref<32x32xf32, #tpu.memory_space<vmem>>, vector<32x32xf32>
    %cst_7 = arith.constant dense<0.000000e+00> : vector<32x128xf32>
    %12 = tpu.matmul %11, %10, %cst_7 {dimension_numbers = #tpu.dot_dimension_numbers<[1], [0], [0], [1], [0, 0, 1, 1], [], []>} : vector<32x32xf32>, vector<32x128xf32>, vector<32x128xf32> -> vector<32x128xf32>
    %13 = vector.broadcast %3 : vector<32x1xf32> to vector<32x128xf32>
    %14 = arith.addf %12, %13 : vector<32x128xf32>
    %15 = math.tanh %14 : vector<32x128xf32>
    %16 = vector.broadcast %4 : vector<32x1xf32> to vector<32x128xf32>
    %17 = arith.mulf %16, %15 : vector<32x128xf32>
    %cst_8 = arith.constant dense<0.000000e+00> : vector<128xf32>
    %18 = vector.multi_reduction <add>, %17, %cst_8 [0] : vector<32x128xf32> to vector<128xf32>
    %19 = vector.shape_cast %18 : vector<128xf32> to vector<1x128xf32>
    %20 = vector.broadcast %5 : vector<1x1xf32> to vector<1x128xf32>
    %21 = arith.addf %19, %20 : vector<1x128xf32>
    %22 = arith.negf %21 : vector<1x128xf32>
    %23 = math.exp %22 : vector<1x128xf32>
    %cst_9 = arith.constant 1.000000e+00 : f32
    %24 = vector.broadcast %cst_9 : f32 to vector<1x128xf32>
    %25 = arith.addf %24, %23 : vector<1x128xf32>
    %26 = arith.divf %24, %25 : vector<1x128xf32>
    %c0_10 = arith.constant 0 : index
    %c0_11 = arith.constant 0 : index
    %27 = vector.load %arg5[%c0_10, %c0_11] : memref<1x128xf32, #tpu.memory_space<vmem>>, vector<1x128xf32>
    tpu.vector_store %arg5[%c0_10, %c0_11], %26 {strides = array<i32>} : memref<1x128xf32, #tpu.memory_space<vmem>>, vector<1x128xf32>,
    return
  }
  func.func @transform_0(%arg0: i32) -> (i32, i32) {
    %c0_i32 = arith.constant 0 : i32
    %c0_i32_0 = arith.constant 0 : i32
    return %arg0, %c0_i32 : i32, i32
  }
  func.func @transform_1(%arg0: i32) -> (i32, i32) {
    %c0_i32 = arith.constant 0 : i32
    %c0_i32_0 = arith.constant 0 : i32
    %c0_i32_1 = arith.constant 0 : i32
    return %c0_i32, %c0_i32_0 : i32, i32
  }
  func.func @transform_2(%arg0: i32) -> (i32, i32) {
    %c0_i32 = arith.constant 0 : i32
    %c0_i32_0 = arith.constant 0 : i32
    %c0_i32_1 = arith.constant 0 : i32
    return %c0_i32, %c0_i32_0 : i32, i32
  }
  func.func @transform_3(%arg0: i32) -> (i32, i32) {
    %c0_i32 = arith.constant 0 : i32
    %c0_i32_0 = arith.constant 0 : i32
    %c0_i32_1 = arith.constant 0 : i32
    return %c0_i32, %c0_i32_0 : i32, i32
  }
  func.func @transform_4(%arg0: i32) -> (i32, i32) {
    %c0_i32 = arith.constant 0 : i32
    %c0_i32_0 = arith.constant 0 : i32
    return %arg0, %c0_i32 : i32, i32
  }
}

</mosaic_0001>

<llo_original>
// kernel: tpu_custom_call.1
$region0: #{tpu_custom_call.1}
  #allocation0 [shape = 'u32[]', space=smem, size = 0x4, offset = 0x4, fixed_abs, tag = 'smem constant byte address 0x4 - core index']
  #allocation1 [shape = 'u32[144,128]{1,0:T(1,128)}', space=vmem, size = 0x12000, scoped, tag = 'internal scratch']
  %s0 = inlined_call_operand.vmem [shape: f32[97,2], index: 0, kind: input, shape index: {}]
  %s1 = inlined_call_operand.vmem [shape: f32[32,2], index: 1, kind: input, shape index: {}]
  %s2 = inlined_call_operand.vmem [shape: f32[32,32], index: 2, kind: input, shape index: {}]
  %s3 = inlined_call_operand.vmem [shape: f32[32,4], index: 3, kind: input, shape index: {}]
  %s4 = inlined_call_operand.hbm [shape: f32[1,128], index: 4, kind: output, shape index: {}]
  %s5 = sld [smem:[#allocation0]]
  $region26: #{tpu_custom_call.1} parent=0
    _
  %s7 = ssub.s32 1, %s5
  %s8 = scalar_select 0, %s7, %s5
  $region1: #{tpu_custom_call.1} parent=0
    #allocation2 [shape = 'u8[512]{0}', space=vmem, size = 0x400, scoped, tag = 'output window, operand 0, single buffered']
    #allocation3 [shape = 's32[1]{0}', space=sflag, size = 0x4, scoped, tag = 'scoped memory for tpu_custom_call.1']
    %9 = vsyncpa [#allocation3], 0
    // Predicated region
    $region2: #{tpu_custom_call.1} parent=1 // pred_check
      _
    $region3: #{tpu_custom_call.1} parent=1 // pred_check_branch
      %11 = sbr.rel (0) target = $region5
    $region4: #{tpu_custom_call.1} parent=1 // pred_region
      _
    $region5: #{tpu_custom_call.1} parent=1 // pred_fallthru
      _
    // Predicated region
    $region6: #{tpu_custom_call.1} parent=1 // pred_check
      _
    $region7: #{tpu_custom_call.1} parent=1 // pred_check_branch
      %13 = sbr.rel (0) target = $region9
    $region8: #{tpu_custom_call.1} parent=1 // pred_region
      _
    $region9: #{tpu_custom_call.1} parent=1 // pred_fallthru
      _
    // Predicated region
    $region10: #{tpu_custom_call.1} parent=1 // pred_check
      _
    $region11: #{tpu_custom_call.1} parent=1 // pred_check_branch
      %15 = sbr.rel (0) target = $region13
    $region12: #{tpu_custom_call.1} parent=1 // pred_region
      _
    $region13: #{tpu_custom_call.1} parent=1 // pred_fallthru
      _
    // Predicated region
    $region14: #{tpu_custom_call.1} parent=1 // pred_check
      _
    $region15: #{tpu_custom_call.1} parent=1 // pred_check_branch
      %17 = sbr.rel (0) target = $region17
    $region16: #{tpu_custom_call.1} parent=1 // pred_region
      _
    $region17: #{tpu_custom_call.1} parent=1 // pred_fallthru
      _
    %v18 = vld [vmem:[%s0] sm:$0xff]
    %v19 = vld [vmem:[%s0 + $0x8] sm:$0xff]
    %v20 = vld [vmem:[%s0 + $0x10] sm:$0xff]
    %v21 = vld [vmem:[%s0 + $0x18] sm:$0xff]
    %v22 = vld [vmem:[%s0 + $0x20] sm:$0xff]
    %v23 = vld [vmem:[%s0 + $0x28] sm:$0xff]
    %v24 = vld [vmem:[%s0 + $0x30] sm:$0xff]
    %v25 = vld [vmem:[%s0 + $0x38] sm:$0xff]
    %v26 = vld [vmem:[%s0 + $0x40] sm:$0xff]
    %v27 = vld [vmem:[%s0 + $0x48] sm:$0xff]
    %v28 = vld [vmem:[%s0 + $0x50] sm:$0xff]
    %v29 = vld [vmem:[%s0 + $0x58] sm:$0xff]
    %v30 = vld [vmem:[%s0 + $0x60] sm:$0xff]
    %v31 = vld [vmem:[%s0 + $0x68] sm:$0xff]
    %v32 = vld [vmem:[%s0 + $0x70] sm:$0xff]
    %v33 = vld [vmem:[%s0 + $0x78] sm:$0xff]
    %v34 = vld [vmem:[%s3] sm:$0xff]
    %v35 = vld [vmem:[%s3 + $0x8] sm:$0xff]
    %v36 = vld [vmem:[%s3 + $0x10] sm:$0xff]
    %v37 = vld [vmem:[%s3 + $0x18] sm:$0xff]
    %v38 = vld [vmem:[%s1] sm:$0xff]
    %v39 = vld [vmem:[%s1 + $0x8] sm:$0xff]
    %v40 = vld [vmem:[%s1 + $0x10] sm:$0xff]
    %v41 = vld [vmem:[%s1 + $0x18] sm:$0xff]
    %43 = vset.pattern.permute.xlu0 0
    %44 = vperm.xlu0 %43, %v34
    %v45 = vpop.permute.xlu0 %44
    %48 = vset.pattern.permute.xlu0 0
    %49 = vperm.xlu0 %48, %v35
    %v50 = vpop.permute.xlu0 %49
    %53 = vset.pattern.permute.xlu0 0
    %54 = vperm.xlu0 %53, %v36
    %v55 = vpop.permute.xlu0 %54
    %58 = vset.pattern.permute.xlu0 0
    %59 = vperm.xlu0 %58, %v37
    %v60 = vpop.permute.xlu0 %59
    %vm62 = vcmask 15360
    %v64 = vsel %vm62, %v38, 0
    %v67 = vsel %vm62, %v39, 0
    %v70 = vsel %vm62, %v40, 0
    %v73 = vsel %vm62, %v41, 0
    %v76 = vsel %vm62, %v18, 0
    %v79 = vsel %vm62, %v19, 0
    %v82 = vsel %vm62, %v20, 0
    %v85 = vsel %vm62, %v21, 0
    %v88 = vsel %vm62, %v22, 0
    %v91 = vsel %vm62, %v23, 0
    %v94 = vsel %vm62, %v24, 0
    %v97 = vsel %vm62, %v25, 0
    %v100 = vsel %vm62, %v26, 0
    %v103 = vsel %vm62, %v27, 0
    %v106 = vsel %vm62, %v28, 0
    %v109 = vsel %vm62, %v29, 0
    %v112 = vsel %vm62, %v30, 0
    %v115 = vsel %vm62, %v31, 0
    %v118 = vsel %vm62, %v32, 0
    %v121 = vsel %vm62, %v33, 0
    %123 = vmatprep.subr.mxu0 0.0
    %124 = vmatpush1.xpose.msra.mxu0 %v76
    %125 = vmatprep.subr.mxu0 0.0
    %126 = vmatpush1.xpose.msra.mxu0 %v79
    %127 = vmatprep.subr.mxu0 0.0
    %128 = vmatpush1.xpose.msra.mxu0 %v82
    %129 = vmatprep.subr.mxu0 0.0
    %130 = vmatpush1.xpose.msra.mxu0 %v85
    %131 = vmatprep.subr.mxu0 0.0
    %132 = vmatpush1.xpose.msra.mxu0 %v88
    %133 = vmatprep.subr.mxu0 0.0
    %134 = vmatpush1.xpose.msra.mxu0 %v91
    %135 = vmatprep.subr.mxu0 0.0
    %136 = vmatpush1.xpose.msra.mxu0 %v94
    %137 = vmatprep.subr.mxu0 0.0
    %138 = vmatpush1.xpose.msra.mxu0 %v97
    %139 = vmatprep.subr.mxu0 0.0
    %140 = vmatpush1.xpose.msra.mxu0 %v100
    %141 = vmatprep.subr.mxu0 0.0
    %142 = vmatpush1.xpose.msra.mxu0 %v103
    %143 = vmatprep.subr.mxu0 0.0
    %144 = vmatpush1.xpose.msra.mxu0 %v106
    %145 = vmatprep.subr.mxu0 0.0
    %146 = vmatpush1.xpose.msra.mxu0 %v109
    %147 = vmatprep.subr.mxu0 0.0
    %148 = vmatpush1.xpose.msra.mxu0 %v112
    %149 = vmatprep.subr.mxu0 0.0
    %150 = vmatpush1.xpose.msra.mxu0 %v115
    %151 = vmatprep.subr.mxu0 0.0
    %152 = vmatpush1.xpose.msra.mxu0 %v118
    %153 = vmatprep.subr.mxu0 0.0
    %154 = vmatpush1.xpose.msra.mxu0 %v121
    %155 = vmatprep.subr.mxu0 0.0
    %156 = vmatpush1.xpose.msra.mxu0 0.0
    %157 = vmatprep.subr.mxu0 0.0
    %158 = vmatpush1.xpose.msra.mxu0 0.0
    %159 = vmatprep.subr.mxu0 0.0
    %160 = vmatpush1.xpose.msra.mxu0 0.0
    %161 = vmatprep.subr.mxu0 0.0
    %162 = vmatpush1.xpose.msra.mxu0 0.0
    %163 = vmatprep.subr.mxu0 0.0
    %164 = vmatpush1.xpose.msra.mxu0 0.0
    %165 = vmatprep.subr.mxu0 0.0
    %166 = vmatpush1.xpose.msra.mxu0 0.0
    %167 = vmatprep.subr.mxu0 0.0
    %168 = vmatpush1.xpose.msra.mxu0 0.0
    %169 = vmatprep.subr.mxu0 0.0
    %170 = vmatpush1.xpose.msra.mxu0 0.0
    %171 = vmatprep.subr.mxu0 0.0
    %172 = vmatpush1.xpose.msra.mxu0 0.0
    %173 = vmatprep.subr.mxu0 0.0
    %174 = vmatpush1.xpose.msra.mxu0 0.0
    %175 = vmatprep.subr.mxu0 0.0
    %176 = vmatpush1.xpose.msra.mxu0 0.0
    %177 = vmatprep.subr.mxu0 0.0
    %178 = vmatpush1.xpose.msra.mxu0 0.0
    %179 = vmatprep.subr.mxu0 0.0
    %180 = vmatpush1.xpose.msra.mxu0 0.0
    %181 = vmatprep.subr.mxu0 0.0
    %182 = vmatpush1.xpose.msra.mxu0 0.0
    %183 = vmatprep.subr.mxu0 0.0
    %184 = vmatpush1.xpose.msra.mxu0 0.0
    %185 = vmatprep.subr.mxu0 0.0
    %186 = vmatpush1.xpose.msra.mxu0 0.0
    %187 = vmatprep.mubr.f32.mxu0 0.0
    %188 = vmatmul.mubr.f32.gmra.mrb[0].mxu0 %v64
    %v189 = vpop.f32.mrb[0].mxu0
    %v190 = vadd.f32 %v45, %v189
    %v191 = vpop.f32.mrb[0].mxu0
    %192 = vmatprep.mubr.f32.mxu0 0.0
    %193 = vmatmul.mubr.f32.gmra.mrb[0].mxu0 %v67
    %v194 = vpop.f32.mrb[0].mxu0
    %v195 = vadd.f32 %v50, %v194
    %v196 = vpop.f32.mrb[0].mxu0
    %197 = vmatprep.mubr.f32.mxu0 0.0
    %198 = vmatmul.mubr.f32.gmra.mrb[0].mxu0 %v70
    %v199 = vpop.f32.mrb[0].mxu0
    %v200 = vadd.f32 %v55, %v199
    %v201 = vpop.f32.mrb[0].mxu0
    %202 = vmatprep.mubr.f32.mxu0 0.0
    %203 = vmatmul.mubr.f32.gmra.mrb[0].mxu0 %v73
    %v204 = vpop.f32.mrb[0].mxu0
    %v205 = vadd.f32 %v60, %v204
    %v206 = vpop.f32.mrb[0].mxu0
    %207 = vdwg.mxu0
    %v208 = vtanh.pop %v190
    %v209 = vtanh.pop %v195
    %v210 = vtanh.pop %v200
    %v211 = vtanh.pop %v205
    %v212 = vld [vmem:[%s2] sm:$0xff]
    %v213 = vld [vmem:[%s2 + $0x8] sm:$0xff]
    %v214 = vld [vmem:[%s2 + $0x10] sm:$0xff]
    %v215 = vld [vmem:[%s2 + $0x18] sm:$0xff]
    %216 = vset.pattern.permute.xlu0 1
    %217 = vperm.xlu0 %216, %v34
    %v218 = vpop.permute.xlu0 %217
    %220 = vset.pattern.permute.xlu0 1
    %221 = vperm.xlu0 %220, %v35
    %v222 = vpop.permute.xlu0 %221
    %224 = vset.pattern.permute.xlu0 1
    %225 = vperm.xlu0 %224, %v36
    %v226 = vpop.permute.xlu0 %225
    %228 = vset.pattern.permute.xlu0 1
    %229 = vperm.xlu0 %228, %v37
    %v230 = vpop.permute.xlu0 %229
    %vm232 = vcmask 261120
    %v234 = vsel %vm232, %v212, 0
    %v237 = vsel %vm232, %v213, 0
    %v240 = vsel %vm232, %v214, 0
    %v243 = vsel %vm232, %v215, 0
    %245 = vmatprep.subr.mxu0 0.0
    %246 = vmatpush1.msra.mxu0 %v208
    %247 = vmatprep.subr.mxu0 0.0
    %248 = vmatpush1.msra.mxu0 %v209
    %249 = vmatprep.subr.mxu0 0.0
    %250 = vmatpush1.msra.mxu0 %v210
    %251 = vmatprep.subr.mxu0 0.0
    %252 = vmatpush1.msra.mxu0 %v211
    %253 = vmatprep.subr.mxu0 0.0
    %254 = vmatpush1.msra.mxu0 0.0
    %255 = vmatprep.subr.mxu0 0.0
    %256 = vmatpush1.msra.mxu0 0.0
    %257 = vmatprep.subr.mxu0 0.0
    %258 = vmatpush1.msra.mxu0 0.0
    %259 = vmatprep.subr.mxu0 0.0
    %260 = vmatpush1.msra.mxu0 0.0
    %261 = vmatprep.subr.mxu0 0.0
    %262 = vmatpush1.msra.mxu0 0.0
    %263 = vmatprep.subr.mxu0 0.0
    %264 = vmatpush1.msra.mxu0 0.0
    %265 = vmatprep.subr.mxu0 0.0
    %266 = vmatpush1.msra.mxu0 0.0
    %267 = vmatprep.subr.mxu0 0.0
    %268 = vmatpush1.msra.mxu0 0.0
    %269 = vmatprep.subr.mxu0 0.0
    %270 = vmatpush1.msra.mxu0 0.0
    %271 = vmatprep.subr.mxu0 0.0
    %272 = vmatpush1.msra.mxu0 0.0
    %273 = vmatprep.subr.mxu0 0.0
    %274 = vmatpush1.msra.mxu0 0.0
    %275 = vmatprep.subr.mxu0 0.0
    %276 = vmatpush1.msra.mxu0 0.0
    %277 = vmatprep.subr.mxu0 0.0
    %278 = vmatpush1.msra.mxu0 0.0
    %279 = vmatprep.subr.mxu0 0.0
    %280 = vmatpush1.msra.mxu0 0.0
    %281 = vmatprep.subr.mxu0 0.0
    %282 = vmatpush1.msra.mxu0 0.0
    %283 = vmatprep.subr.mxu0 0.0
    %284 = vmatpush1.msra.mxu0 0.0
    %285 = vmatprep.subr.mxu0 0.0
    %286 = vmatpush1.msra.mxu0 0.0
    %287 = vmatprep.subr.mxu0 0.0
    %288 = vmatpush1.msra.mxu0 0.0
    %289 = vmatprep.subr.mxu0 0.0
    %290 = vmatpush1.msra.mxu0 0.0
    %291 = vmatprep.subr.mxu0 0.0
    %292 = vmatpush1.msra.mxu0 0.0
    %293 = vmatprep.subr.mxu0 0.0
    %294 = vmatpush1.msra.mxu0 0.0
    %295 = vmatprep.subr.mxu0 0.0
    %296 = vmatpush1.msra.mxu0 0.0
    %297 = vmatprep.subr.mxu0 0.0
    %298 = vmatpush1.msra.mxu0 0.0
    %299 = vmatprep.subr.mxu0 0.0
    %300 = vmatpush1.msra.mxu0 0.0
    %301 = vmatprep.subr.mxu0 0.0
    %302 = vmatpush1.msra.mxu0 0.0
    %303 = vmatprep.subr.mxu0 0.0
    %304 = vmatpush1.msra.mxu0 0.0
    %305 = vmatprep.subr.mxu0 0.0
    %306 = vmatpush1.msra.mxu0 0.0
    %307 = vmatprep.subr.mxu0 0.0
    %308 = vmatpush1.msra.mxu0 0.0
    %309 = vmatprep.mubr.f32.mxu0 0.0
    %310 = vmatmul.mubr.f32.gmra.mrb[0].mxu0 %v234
    %v311 = vpop.f32.mrb[0].mxu0
    %v312 = vadd.f32 %v218, %v311
    %v313 = vpop.f32.mrb[0].mxu0
    %314 = vmatprep.mubr.f32.mxu0 0.0
    %315 = vmatmul.mubr.f32.gmra.mrb[0].mxu0 %v237
    %v316 = vpop.f32.mrb[0].mxu0
    %v317 = vadd.f32 %v222, %v316
    %v318 = vpop.f32.mrb[0].mxu0
    %319 = vmatprep.mubr.f32.mxu0 0.0
    %320 = vmatmul.mubr.f32.gmra.mrb[0].mxu0 %v240
    %v321 = vpop.f32.mrb[0].mxu0
    %v322 = vadd.f32 %v226, %v321
    %v323 = vpop.f32.mrb[0].mxu0
    %324 = vmatprep.mubr.f32.mxu0 0.0
    %325 = vmatmul.mubr.f32.gmra.mrb[0].mxu0 %v243
    %v326 = vpop.f32.mrb[0].mxu0
    %v327 = vadd.f32 %v230, %v326
    %v328 = vpop.f32.mrb[0].mxu0
    %329 = vdwg.mxu0
    %v330 = vtanh.pop %v312
    %v331 = vtanh.pop %v317
    %v332 = vtanh.pop %v322
    %v333 = vtanh.pop %v327
    %334 = vset.pattern.permute.xlu0 2
    %335 = vperm.xlu0 %334, %v34
    %v336 = vpop.permute.xlu0 %335
    %338 = vset.pattern.permute.xlu0 2
    %339 = vperm.xlu0 %338, %v35
    %v340 = vpop.permute.xlu0 %339
    %342 = vset.pattern.permute.xlu0 2
    %343 = vperm.xlu0 %342, %v36
    %v344 = vpop.permute.xlu0 %343
    %346 = vset.pattern.permute.xlu0 2
    %347 = vperm.xlu0 %346, %v37
    %v348 = vpop.permute.xlu0 %347
    %v350 = vmul.f32 %v336, %v330
    %v351 = vmul.f32 %v340, %v331
    %v352 = vmul.f32 %v344, %v332
    %v353 = vmul.f32 %v348, %v333
    %v354 = vadd.f32 %v350, %v351
    %v355 = vadd.f32 %v354, %v352
    %v356 = vadd.f32 %v355, %v353
    %v357 = vrot.slane %v356, 4
    %v358 = vadd.f32 %v356, %v357
    %v359 = vrot.slane %v358, 2
    %v360 = vadd.f32 %v358, %v359
    %v361 = vrot.slane %v360, 1
    %v362 = vadd.f32 %v360, %v361
    %363 = vset.pattern.permute.xlu0 3
    %364 = vperm.xlu0 %363, %v34
    %v365 = vpop.permute.xlu0 %364
    %v367 = vadd.f32 %v362, %v365
    %v368 = vxor.u32 %v367, 2147483648
    %v369 = vmul.f32 %v368, 1.442695
    %v370 = vpow.pop %v369
    %v371 = vadd.f32 %v370, 1.0
    %v372 = vrcp.pop %v371
    %v373 = vmul.f32 1.0, %v372
    %374 = vst [vmem:[#allocation2] sm:$0x1] %v373
    // Predicated region
    $region18: #{tpu_custom_call.1} parent=1 // pred_check
      _
    $region19: #{tpu_custom_call.1} parent=1 // pred_check_branch
      %376 = sbr.rel (0) target = $region21
    $region20: #{tpu_custom_call.1} parent=1 // pred_region
      %s378 = ssub.s32 16, 16
      %379 = vsyncadd [#allocation3], %s378
      %s381 = sshll.u32 [#allocation2], 4
      %s382 = int_to_ptr.vmem [resolvable:$true] %s381
      %384 = dma.vmem_to_hbm [thread:$0]  %s382, 16, %s4, [#allocation3]
    $region21: #{tpu_custom_call.1} parent=1 // pred_fallthru
      _
    // Predicated region
    $region22: #{tpu_custom_call.1} parent=1 // pred_check
      _
    $region23: #{tpu_custom_call.1} parent=1 // pred_check_branch
      %386 = sbr.rel (0) target = $region25
    $region24: #{tpu_custom_call.1} parent=1 // pred_region
      %387 = dma.done [#allocation3], 16
    $region25: #{tpu_custom_call.1} parent=1 // pred_fallthru
      _
    %388 = vsyncpa [#allocation3], 1

</llo_original>
